<compile_context>
chip_gen: v7x
topology: tpu7x:2x2x1
jax: 0.10.0
libtpu: 0.0.40
codegen_flags: <defaults>
</compile_context>

<pallas_src>
import functools

import jax
import jax.numpy as jnp
from jax.experimental import pallas as pl
from jax.experimental.pallas import tpu as pltpu

BN_EPS = 1e-5
NEG_SLOPE = 0.1
LANE = 128
TILE_CO = 128                     # channel tile = MXU height (native on v5e, efficient on v6e/v7x)
MAX_TILE_M = 1024                 # lane tile over N*Hout*Wout (multiple of 128)
VMEM_BUDGET = 12 * 1024 * 1024    # keep double-buffered blocks well under scoped VMEM (all gens)
VMEM_LIMIT = 32 * 1024 * 1024     # safe on v5e / v6e / v7x


def _round_up(a, b):
    return ((a + b - 1) // b) * b


# ----- Pass 1: conv-as-matmul on the MXU (bf16 in, f32 accum) + per-channel sum / sumsq ---------
def _matmul_stats_kernel(w_ref, p_ref, y_ref, sum_ref, sq_ref):
    # w_ref: (TILE_CO, Kdim) bf16, p_ref: (Kdim, tile_m) bf16, y_ref: (TILE_CO, tile_m) f32
    y = jnp.dot(w_ref[...], p_ref[...], preferred_element_type=jnp.float32)
    y_ref[...] = y

    @pl.when(pl.program_id(1) == 0)
    def _():
        sum_ref[...] = jnp.zeros_like(sum_ref)
        sq_ref[...] = jnp.zeros_like(sq_ref)

    # Padded M columns are exact zeros -> contribute nothing to the sums.
    sum_ref[...] += jnp.sum(y, axis=1, keepdims=True)
    sq_ref[...] += jnp.sum(y * y, axis=1, keepdims=True)


# ----- Pass 2: folded BatchNorm (single scale/shift per channel) + LeakyReLU --------------------
def _norm_act_kernel(y_ref, scale_ref, shift_ref, o_ref, *, act: bool):
    z = y_ref[...] * scale_ref[...] + shift_ref[...]
    if act:
        z = jnp.where(z >= 0, z, NEG_SLOPE * z)
    o_ref[...] = z.astype(o_ref.dtype)


def _im2col(x, k, p, s, d):
    """x: (N, C, H, W) -> (C*k*k, N*Hout*Wout), ordering (C, kh, kw) to match OIHW reshape."""
    N, C, H, W = x.shape
    Hout = (H + 2 * p - d * (k - 1) - 1) // s + 1
    Wout = (W + 2 * p - d * (k - 1) - 1) // s + 1
    if k == 1 and p == 0 and s == 1:
        # 1x1 conv: im2col is just a transpose/reshape (no patch duplication).
        return x.transpose(1, 0, 2, 3).reshape(C, N * H * W), Hout, Wout
    # TODO(synk): for k>1 this materializes a k^2-inflated patch matrix in HBM; the next step is
    # streaming (cin, kh, kw) slices of the padded input directly via a K grid axis + index_map.
    xp = jnp.pad(x, ((0, 0), (0, 0), (p, p), (p, p)))
    cols = []
    for kh in range(k):
        for kw in range(k):
            sl = xp[:, :, kh * d: kh * d + s * Hout: s, kw * d: kw * d + s * Wout: s]
            cols.append(sl)                      # (N, C, Hout, Wout)
    patches = jnp.stack(cols, axis=2)            # (N, C, k*k, Hout, Wout)
    patches = patches.transpose(1, 2, 0, 3, 4)   # (C, k*k, N, Hout, Wout)
    return patches.reshape(C * k * k, N * Hout * Wout), Hout, Wout


def _pick_tile_m(M, Kdim):
    tile_m = min(MAX_TILE_M, _round_up(M, LANE))

    def vmem_bytes(tm):
        # double-buffered: W bf16 + P bf16 + y f32 blocks
        return 2 * (TILE_CO * Kdim * 2 + Kdim * tm * 2 + TILE_CO * tm * 4)

    while tile_m > LANE and vmem_bytes(tile_m) > VMEM_BUDGET:
        tile_m = _round_up(tile_m // 2, LANE)
    return max(tile_m, LANE)


def conv_forward(x, weight, gamma, beta, *, k=1, p=0, s=1, d=1, act=True):
    """Equivalent of Conv(in_ch, out_ch, k, p, s, d, act).forward(x) with training-mode BN."""
    x = x.astype(jnp.float32)
    N, Cin, H, W = x.shape
    Cout = weight.shape[0]

    P, Hout, Wout = _im2col(x, k, p, s, d)          # (Kdim, M) f32
    Kdim, M = P.shape

    Cout_pad = _round_up(Cout, TILE_CO)
    Kdim_pad = _round_up(Kdim, 16)                  # bf16 sublane packing; zero rows are inert
    tile_m = _pick_tile_m(M, Kdim_pad)
    M_pad = _round_up(M, tile_m)
    n_co = Cout_pad // TILE_CO
    n_m = M_pad // tile_m

    # bf16 matmul operands (MXU-native on all generations), zero-padded to the tile grid.
    Wm = weight.reshape(Cout, Kdim).astype(jnp.float32)
    Wm = jnp.pad(Wm, ((0, Cout_pad - Cout), (0, Kdim_pad - Kdim))).astype(jnp.bfloat16)
    Pb = jnp.pad(P, ((0, Kdim_pad - Kdim), (0, M_pad - M))).astype(jnp.bfloat16)

    grid = (n_co, n_m)
    cparams1 = pltpu.CompilerParams(
        dimension_semantics=("parallel", "arbitrary"),   # stats accumulate across the M axis
        vmem_limit_bytes=VMEM_LIMIT,
    )
    y, ysum, ysq = pl.pallas_call(
        _matmul_stats_kernel,
        out_shape=(
            jax.ShapeDtypeStruct((Cout_pad, M_pad), jnp.float32),  # pre-BN conv output
            jax.ShapeDtypeStruct((Cout_pad, 1), jnp.float32),      # per-channel sum
            jax.ShapeDtypeStruct((Cout_pad, 1), jnp.float32),      # per-channel sum of squares
        ),
        grid_spec=pltpu.PrefetchScalarGridSpec(
            num_scalar_prefetch=0,
            grid=grid,
            in_specs=[
                pl.BlockSpec((TILE_CO, Kdim_pad), lambda i, j: (i, 0)),   # conv weight rows
                pl.BlockSpec((Kdim_pad, tile_m), lambda i, j: (0, j)),    # streamed im2col tile
            ],
            out_specs=[
                pl.BlockSpec((TILE_CO, tile_m), lambda i, j: (i, j)),
                pl.BlockSpec((TILE_CO, 1), lambda i, j: (i, 0)),          # resident across M axis
                pl.BlockSpec((TILE_CO, 1), lambda i, j: (i, 0)),
            ],
        ),
        compiler_params=cparams1,
    )(Wm, Pb)

    # Fold training-mode BN into one per-channel scale/shift (tiny vectors, plain JAX).
    mean = ysum[:, 0] / M
    var = jnp.maximum(ysq[:, 0] / M - mean * mean, 0.0)   # biased variance; padding cols are zero
    inv_std = jax.lax.rsqrt(var + BN_EPS)
    gamma_pad = jnp.pad(gamma.astype(jnp.float32), (0, Cout_pad - Cout))
    beta_pad = jnp.pad(beta.astype(jnp.float32), (0, Cout_pad - Cout))
    scale = (gamma_pad * inv_std).reshape(Cout_pad, 1)
    shift = (beta_pad - mean * gamma_pad * inv_std).reshape(Cout_pad, 1)

    cparams2 = pltpu.CompilerParams(
        dimension_semantics=("parallel", "parallel"),     # pure elementwise; shards on v7x's 2 TCs
        vmem_limit_bytes=VMEM_LIMIT,
    )
    kernel2 = functools.partial(_norm_act_kernel, act=act)
    o = pl.pallas_call(
        kernel2,
        out_shape=jax.ShapeDtypeStruct((Cout_pad, M_pad), jnp.float32),
        grid_spec=pltpu.PrefetchScalarGridSpec(
            num_scalar_prefetch=0,
            grid=grid,
            in_specs=[
                pl.BlockSpec((TILE_CO, tile_m), lambda i, j: (i, j)),
                pl.BlockSpec((TILE_CO, 1), lambda i, j: (i, 0)),
                pl.BlockSpec((TILE_CO, 1), lambda i, j: (i, 0)),
            ],
            out_specs=pl.BlockSpec((TILE_CO, tile_m), lambda i, j: (i, j)),
        ),
        compiler_params=cparams2,
    )(y, scale, shift)

    # (Cout_pad, M_pad) -> slice padding -> NCHW
    o = o[:Cout, :M].reshape(Cout, N, Hout, Wout).transpose(1, 0, 2, 3)
    return o


def _reference(x, weight, gamma, beta, *, k=1, p=0, s=1, d=1, act=True):
    y = jax.lax.conv_general_dilated(
        x.astype(jnp.float32), weight.astype(jnp.float32),
        window_strides=(s, s), padding=[(p, p), (p, p)], rhs_dilation=(d, d),
        dimension_numbers=("NCHW", "OIHW", "NCHW"))
    mean = y.mean(axis=(0, 2, 3), keepdims=True)
    var = jnp.square(y - mean).mean(axis=(0, 2, 3), keepdims=True)
    z = (y - mean) / jnp.sqrt(var + BN_EPS)
    z = z * gamma.reshape(1, -1, 1, 1) + beta.reshape(1, -1, 1, 1)
    return jnp.where(z >= 0, z, NEG_SLOPE * z) if act else z


if __name__ == "__main__":
    key = jax.random.PRNGKey(0)
    kx, kw, kg, kb, kw3 = jax.random.split(key, 5)

    N, Cin, Cout, H, W = 2, 4, 8, 16, 16
    x = jax.random.normal(kx, (N, Cin, H, W), dtype=jnp.float32)

    # Default module config: Conv(in_ch=4, out_ch=8) -> k=1, p=0, s=1, d=1, act=True
    w1 = jax.random.normal(kw, (Cout, Cin, 1, 1), dtype=jnp.float32) * 0.1
    gamma = 1.0 + 0.05 * jax.random.normal(kg, (Cout,), dtype=jnp.float32)
    beta = 0.05 * jax.random.normal(kb, (Cout,), dtype=jnp.float32)

    out1 = conv_forward(x, w1, gamma, beta, k=1, p=0, s=1, d=1, act=True)
    jax.block_until_ready(out1)
    ref1 = _reference(x, w1, gamma, beta, k=1, p=0, s=1, d=1, act=True)
    assert out1.shape == (N, Cout, H, W)
    assert jnp.allclose(out1, ref1, atol=5e-2, rtol=5e-2), float(jnp.max(jnp.abs(out1 - ref1)))

    # 3x3 case to exercise the general im2col path: Conv(4, 8, k=3, p=1)
    w3 = jax.random.normal(kw3, (Cout, Cin, 3, 3), dtype=jnp.float32) * 0.1
    out3 = conv_forward(x, w3, gamma, beta, k=3, p=1, s=1, d=1, act=True)
    jax.block_until_ready(out3)
    ref3 = _reference(x, w3, gamma, beta, k=3, p=1, s=1, d=1, act=True)
    assert out3.shape == (N, Cout, H, W)
    assert jnp.allclose(out3, ref3, atol=5e-2, rtol=5e-2), float(jnp.max(jnp.abs(out3 - ref3)))

    print("KERNEL_OK")
</pallas_src>

<mosaic_0001>
module attributes {stable_mosaic.version = 11 : i64} {
  func.func @_matmul_stats_kernel(%arg0: i32, %arg1: i32, %arg2: memref<128x16xbf16, #tpu.memory_space<vmem>>, %arg3: memref<16x512xbf16, #tpu.memory_space<vmem>>, %arg4: memref<128x512xf32, #tpu.memory_space<vmem>>, %arg5: memref<128x1xf32, #tpu.memory_space<vmem>>, %arg6: memref<128x1xf32, #tpu.memory_space<vmem>>) attributes {dimension_semantics = [#tpu.dimension_semantics<parallel>, #tpu.dimension_semantics<arbitrary>], iteration_bounds = array<i64: 1, 1>, scalar_prefetch = 0 : i64, scratch_operands = 0 : i64, tpu.core_type = #tpu.core_type<tc>, window_params = [{transform_indices = @transform_0, window_bounds = array<i64: 128, 16>}, {transform_indices = @transform_1, window_bounds = array<i64: 16, 512>}, {transform_indices = @transform_2, window_bounds = array<i64: 128, 512>}, {transform_indices = @transform_3, window_bounds = array<i64: 128, 1>}, {transform_indices = @transform_4, window_bounds = array<i64: 128, 1>}]} {
    %c0 = arith.constant 0 : index
    %c0_0 = arith.constant 0 : index
    %0 = vector.load %arg2[%c0, %c0_0] : memref<128x16xbf16, #tpu.memory_space<vmem>>, vector<128x16xbf16>
    %c0_1 = arith.constant 0 : index
    %c0_2 = arith.constant 0 : index
    %1 = vector.load %arg3[%c0_1, %c0_2] : memref<16x512xbf16, #tpu.memory_space<vmem>>, vector<16x512xbf16>
    %cst = arith.constant dense<0.000000e+00> : vector<128x512xf32>
    %2 = tpu.matmul %0, %1, %cst {dimension_numbers = #tpu.dot_dimension_numbers<[1], [0], [0], [1], [0, 0, 1, 1], [], []>} : vector<128x16xbf16>, vector<16x512xbf16>, vector<128x512xf32> -> vector<128x512xf32>
    %c0_3 = arith.constant 0 : index
    %c0_4 = arith.constant 0 : index
    %3 = vector.load %arg4[%c0_3, %c0_4] : memref<128x512xf32, #tpu.memory_space<vmem>>, vector<128x512xf32>
    tpu.vector_store %arg4[%c0_3, %c0_4], %2 {strides = array<i32>} : memref<128x512xf32, #tpu.memory_space<vmem>>, vector<128x512xf32>,
    %c0_i32 = arith.constant 0 : i32
    %4 = arith.cmpi eq, %arg1, %c0_i32 : i32
    %5 = arith.extui %4 : i1 to i32
    %c0_i32_5 = arith.constant 0 : i32
    %6 = arith.cmpi ne, %5, %c0_i32_5 : i32
    scf.if %6 {
      %cst_16 = arith.constant 0.000000e+00 : f32
      %18 = vector.broadcast %cst_16 : f32 to vector<128x1xf32>
      %c0_17 = arith.constant 0 : index
      %c0_18 = arith.constant 0 : index
      %19 = vector.load %arg5[%c0_17, %c0_18] : memref<128x1xf32, #tpu.memory_space<vmem>>, vector<128x1xf32>
      tpu.vector_store %arg5[%c0_17, %c0_18], %18 {strides = array<i32>} : memref<128x1xf32, #tpu.memory_space<vmem>>, vector<128x1xf32>,
      %cst_19 = arith.constant 0.000000e+00 : f32
      %20 = vector.broadcast %cst_19 : f32 to vector<128x1xf32>
      %c0_20 = arith.constant 0 : index
      %c0_21 = arith.constant 0 : index
      %21 = vector.load %arg6[%c0_20, %c0_21] : memref<128x1xf32, #tpu.memory_space<vmem>>, vector<128x1xf32>
      tpu.vector_store %arg6[%c0_20, %c0_21], %20 {strides = array<i32>} : memref<128x1xf32, #tpu.memory_space<vmem>>, vector<128x1xf32>,
    } else {
    }
    %c0_6 = arith.constant 0 : index
    %c0_7 = arith.constant 0 : index
    %7 = vector.load %arg5[%c0_6, %c0_7] : memref<128x1xf32, #tpu.memory_space<vmem>>, vector<128x1xf32>
    %cst_8 = arith.constant dense<0.000000e+00> : vector<128xf32>
    %8 = vector.multi_reduction <add>, %2, %cst_8 [1] : vector<128x512xf32> to vector<128xf32>
    %9 = vector.shape_cast %8 : vector<128xf32> to vector<128x1xf32>
    %10 = arith.addf %7, %9 : vector<128x1xf32>
    %c0_9 = arith.constant 0 : index
    %c0_10 = arith.constant 0 : index
    %11 = vector.load %arg5[%c0_9, %c0_10] : memref<128x1xf32, #tpu.memory_space<vmem>>, vector<128x1xf32>
    tpu.vector_store %arg5[%c0_9, %c0_10], %10 {strides = array<i32>} : memref<128x1xf32, #tpu.memory_space<vmem>>, vector<128x1xf32>,
    %c0_11 = arith.constant 0 : index
    %c0_12 = arith.constant 0 : index
    %12 = vector.load %arg6[%c0_11, %c0_12] : memref<128x1xf32, #tpu.memory_space<vmem>>, vector<128x1xf32>
    %13 = arith.mulf %2, %2 : vector<128x512xf32>
    %cst_13 = arith.constant dense<0.000000e+00> : vector<128xf32>
    %14 = vector.multi_reduction <add>, %13, %cst_13 [1] : vector<128x512xf32> to vector<128xf32>
    %15 = vector.shape_cast %14 : vector<128xf32> to vector<128x1xf32>
    %16 = arith.addf %12, %15 : vector<128x1xf32>
    %c0_14 = arith.constant 0 : index
    %c0_15 = arith.constant 0 : index
    %17 = vector.load %arg6[%c0_14, %c0_15] : memref<128x1xf32, #tpu.memory_space<vmem>>, vector<128x1xf32>
    tpu.vector_store %arg6[%c0_14, %c0_15], %16 {strides = array<i32>} : memref<128x1xf32, #tpu.memory_space<vmem>>, vector<128x1xf32>,
    return
  }
  func.func @transform_0(%arg0: i32, %arg1: i32) -> (i32, i32) {
    %c0_i32 = arith.constant 0 : i32
    %c0_i32_0 = arith.constant 0 : i32
    return %arg0, %c0_i32 : i32, i32
  }
  func.func @transform_1(%arg0: i32, %arg1: i32) -> (i32, i32) {
    %c0_i32 = arith.constant 0 : i32
    %c0_i32_0 = arith.constant 0 : i32
    return %c0_i32, %arg1 : i32, i32
  }
  func.func @transform_2(%arg0: i32, %arg1: i32) -> (i32, i32) {
    %c0_i32 = arith.constant 0 : i32
    return %arg0, %arg1 : i32, i32
  }
  func.func @transform_3(%arg0: i32, %arg1: i32) -> (i32, i32) {
    %c0_i32 = arith.constant 0 : i32
    %c0_i32_0 = arith.constant 0 : i32
    return %arg0, %c0_i32 : i32, i32
  }
  func.func @transform_4(%arg0: i32, %arg1: i32) -> (i32, i32) {
    %c0_i32 = arith.constant 0 : i32
    %c0_i32_0 = arith.constant 0 : i32
    return %arg0, %c0_i32 : i32, i32
  }
}

</mosaic_0001>

<llo_original>
// kernel: tpu_custom_call.1
$region0: #{tpu_custom_call.1}
  #allocation0 [shape = 'u32[]', space=smem, size = 0x4, offset = 0x4, fixed_abs, tag = 'smem constant byte address 0x4 - core index']
  #allocation1 [shape = 'u32[144,128]{1,0:T(1,128)}', space=vmem, size = 0x12000, scoped, tag = 'internal scratch']
  %s0 = inlined_call_operand.vmem [shape: bf16[128,16], index: 0, kind: input, shape index: {}]
  %s1 = inlined_call_operand.vmem [shape: bf16[16,512], index: 1, kind: input, shape index: {}]
  %s2 = inlined_call_operand.hbm [shape: f32[128,512], index: 2, kind: output, shape index: {0}]
  %s3 = inlined_call_operand.vmem [shape: f32[128,1], index: 3, kind: output, shape index: {1}]
  %s4 = inlined_call_operand.vmem [shape: f32[128,1], index: 4, kind: output, shape index: {2}]
  %5 = xla_tuple %s2, %s3, %s4
  %s6 = sld [smem:[#allocation0]]
  $region38: #{tpu_custom_call.1} parent=0
    _
  %s8 = ssub.s32 1, %s6
  %s9 = scalar_select 0, %s8, %s6
  $region1: #{tpu_custom_call.1} parent=0
    #allocation2 [shape = 'u8[262144]{0}', space=vmem, size = 0x40000, scoped, tag = 'output window, operand 0, single buffered']
    #allocation3 [shape = 's32[1]{0}', space=sflag, size = 0x4, scoped, tag = 'scoped memory for tpu_custom_call.1']
    %10 = vsyncpa [#allocation3], 0
    // Predicated region
    $region2: #{tpu_custom_call.1} parent=1 // pred_check
      _
    $region3: #{tpu_custom_call.1} parent=1 // pred_check_branch
      %12 = sbr.rel (0) target = $region5
    $region4: #{tpu_custom_call.1} parent=1 // pred_region
      _
    $region5: #{tpu_custom_call.1} parent=1 // pred_fallthru
      _
    // Predicated region
    $region6: #{tpu_custom_call.1} parent=1 // pred_check
      _
    $region7: #{tpu_custom_call.1} parent=1 // pred_check_branch
      %14 = sbr.rel (0) target = $region9
    $region8: #{tpu_custom_call.1} parent=1 // pred_region
      _
    $region9: #{tpu_custom_call.1} parent=1 // pred_fallthru
      _
    %v16 = vld [vmem:[%s0] sm:$0xf]
    %v17 = vld [vmem:[%s0 + $0x4] sm:$0xf]
    %v18 = vld [vmem:[%s0 + $0x8] sm:$0xf]
    %v19 = vld [vmem:[%s0 + $0xc] sm:$0xf]
    %v20 = vld [vmem:[%s0 + $0x10] sm:$0xf]
    %v21 = vld [vmem:[%s0 + $0x14] sm:$0xf]
    %v22 = vld [vmem:[%s0 + $0x18] sm:$0xf]
    %v23 = vld [vmem:[%s0 + $0x1c] sm:$0xf]
    %v24 = vld [vmem:[%s0 + $0x20] sm:$0xf]
    %v25 = vld [vmem:[%s0 + $0x24] sm:$0xf]
    %v26 = vld [vmem:[%s0 + $0x28] sm:$0xf]
    %v27 = vld [vmem:[%s0 + $0x2c] sm:$0xf]
    %v28 = vld [vmem:[%s0 + $0x30] sm:$0xf]
    %v29 = vld [vmem:[%s0 + $0x34] sm:$0xf]
    %v30 = vld [vmem:[%s0 + $0x38] sm:$0xf]
    %v31 = vld [vmem:[%s0 + $0x3c] sm:$0xf]
    %v32 = vld [vmem:[%s1] sm:$0xff]
    %v33 = vld [vmem:[%s1 + $0x8] sm:$0xff]
    %v34 = vld [vmem:[%s1 + $0x10] sm:$0xff]
    %v35 = vld [vmem:[%s1 + $0x18] sm:$0xff]
    %v52 = vunpack.c.l.b16 %v16
    %v53 = vunpack.c.l.b16 %v17
    %v54 = vunpack.c.l.b16 %v18
    %v55 = vunpack.c.l.b16 %v19
    %v56 = vunpack.c.l.b16 %v20
    %v57 = vunpack.c.l.b16 %v21
    %v58 = vunpack.c.l.b16 %v22
    %v59 = vunpack.c.l.b16 %v23
    %v60 = vunpack.c.l.b16 %v24
    %v61 = vunpack.c.l.b16 %v25
    %v62 = vunpack.c.l.b16 %v26
    %v63 = vunpack.c.l.b16 %v27
    %v64 = vunpack.c.l.b16 %v28
    %v65 = vunpack.c.l.b16 %v29
    %v66 = vunpack.c.l.b16 %v30
    %v67 = vunpack.c.l.b16 %v31
    %v68 = vpack.c.b16 %v53, %v52
    %v69 = vpack.c.b16 %v55, %v54
    %v70 = vpack.c.b16 %v57, %v56
    %v71 = vpack.c.b16 %v59, %v58
    %v72 = vpack.c.b16 %v61, %v60
    %v73 = vpack.c.b16 %v63, %v62
    %v74 = vpack.c.b16 %v65, %v64
    %v75 = vpack.c.b16 %v67, %v66
    %v80 = vunpack.c.l.b16 %v32
    %v81 = vunpack.c.h.b16 %v32
    %v82 = vunpack.c.l.b16 %v33
    %v83 = vunpack.c.h.b16 %v33
    %v84 = vunpack.c.l.b16 %v34
    %v85 = vunpack.c.h.b16 %v34
    %v86 = vunpack.c.l.b16 %v35
    %v87 = vunpack.c.h.b16 %v35
    %v88 = vpack.c.b16 %v84, %v80
    %v89 = vpack.c.b16 %v85, %v81
    %v90 = vpack.c.b16 %v86, %v82
    %v91 = vpack.c.b16 %v87, %v83
    %vm96 = vcmask 130048
    %v98 = vsel %vm96, %v68, 0
    %v101 = vsel %vm96, %v69, 0
    %v104 = vsel %vm96, %v70, 0
    %v107 = vsel %vm96, %v71, 0
    %v110 = vsel %vm96, %v72, 0
    %v113 = vsel %vm96, %v73, 0
    %v116 = vsel %vm96, %v74, 0
    %v119 = vsel %vm96, %v75, 0
    %121 = vmatprep.subr.bf16.mxu0 %v89
    %122 = vmatpush1.bf16.msra.mxu0 %v88
    %123 = vmatprep.subr.bf16.mxu0 0
    %124 = vmatpush1.bf16.msra.mxu0 0
    %125 = vmatprep.subr.bf16.mxu0 0
    %126 = vmatpush1.bf16.msra.mxu0 0
    %127 = vmatprep.subr.bf16.mxu0 0
    %128 = vmatpush1.bf16.msra.mxu0 0
    %129 = vmatprep.subr.bf16.mxu0 0
    %130 = vmatpush1.bf16.msra.mxu0 0
    %131 = vmatprep.subr.bf16.mxu0 0
    %132 = vmatpush1.bf16.msra.mxu0 0
    %133 = vmatprep.subr.bf16.mxu0 0
    %134 = vmatpush1.bf16.msra.mxu0 0
    %135 = vmatprep.subr.bf16.mxu0 0
    %136 = vmatpush1.bf16.msra.mxu0 0
    %137 = vmatprep.subr.bf16.mxu0 0
    %138 = vmatpush1.bf16.msra.mxu0 0
    %139 = vmatprep.subr.bf16.mxu0 0
    %140 = vmatpush1.bf16.msra.mxu0 0
    %141 = vmatprep.subr.bf16.mxu0 0
    %142 = vmatpush1.bf16.msra.mxu0 0
    %143 = vmatprep.subr.bf16.mxu0 0
    %144 = vmatpush1.bf16.msra.mxu0 0
    %145 = vmatprep.subr.bf16.mxu0 0
    %146 = vmatpush1.bf16.msra.mxu0 0
    %147 = vmatprep.subr.bf16.mxu0 0
    %148 = vmatpush1.bf16.msra.mxu0 0
    %149 = vmatprep.subr.bf16.mxu0 0
    %150 = vmatpush1.bf16.msra.mxu0 0
    %151 = vmatprep.subr.bf16.mxu0 0
    %152 = vmatpush1.bf16.msra.mxu0 0
    %153 = vmatprep.mubr.bf16.mxu0 0
    %154 = vmatmul.mubr.bf16.gmra.mrb[0].mxu0 %v98
    %v155 = vpop.f32.mrb[0].mxu0
    %v156 = vadd.f32 0.0, %v155
    %v157 = vpop.f32.mrb[0].mxu0
    %v158 = vadd.f32 0.0, %v157
    %v159 = vpop.f32.mrb[0].mxu0
    %v160 = vadd.f32 0.0, %v159
    %v161 = vpop.f32.mrb[0].mxu0
    %v162 = vadd.f32 0.0, %v161
    %163 = vmatprep.mubr.bf16.mxu0 0
    %164 = vmatmul.mubr.bf16.gmra.mrb[0].mxu0 %v101
    %v165 = vpop.f32.mrb[0].mxu0
    %v166 = vadd.f32 0.0, %v165
    %v167 = vpop.f32.mrb[0].mxu0
    %v168 = vadd.f32 0.0, %v167
    %v169 = vpop.f32.mrb[0].mxu0
    %v170 = vadd.f32 0.0, %v169
    %v171 = vpop.f32.mrb[0].mxu0
    %v172 = vadd.f32 0.0, %v171
    %173 = vmatprep.mubr.bf16.mxu0 0
    %174 = vmatmul.mubr.bf16.gmra.mrb[0].mxu0 %v104
    %v175 = vpop.f32.mrb[0].mxu0
    %v176 = vadd.f32 0.0, %v175
    %v177 = vpop.f32.mrb[0].mxu0
    %v178 = vadd.f32 0.0, %v177
    %v179 = vpop.f32.mrb[0].mxu0
    %v180 = vadd.f32 0.0, %v179
    %v181 = vpop.f32.mrb[0].mxu0
    %v182 = vadd.f32 0.0, %v181
    %183 = vmatprep.mubr.bf16.mxu0 0
    %184 = vmatmul.mubr.bf16.gmra.mrb[0].mxu0 %v107
    %v185 = vpop.f32.mrb[0].mxu0
    %v186 = vadd.f32 0.0, %v185
    %v187 = vpop.f32.mrb[0].mxu0
    %v188 = vadd.f32 0.0, %v187
    %v189 = vpop.f32.mrb[0].mxu0
    %v190 = vadd.f32 0.0, %v189
    %v191 = vpop.f32.mrb[0].mxu0
    %v192 = vadd.f32 0.0, %v191
    %193 = vmatprep.mubr.bf16.mxu0 0
    %194 = vmatmul.mubr.bf16.gmra.mrb[0].mxu0 %v110
    %v195 = vpop.f32.mrb[0].mxu0
    %v196 = vadd.f32 0.0, %v195
    %v197 = vpop.f32.mrb[0].mxu0
    %v198 = vadd.f32 0.0, %v197
    %v199 = vpop.f32.mrb[0].mxu0
    %v200 = vadd.f32 0.0, %v199
    %v201 = vpop.f32.mrb[0].mxu0
    %v202 = vadd.f32 0.0, %v201
    %203 = vmatprep.mubr.bf16.mxu0 0
    %204 = vmatmul.mubr.bf16.gmra.mrb[0].mxu0 %v113
    %v205 = vpop.f32.mrb[0].mxu0
    %v206 = vadd.f32 0.0, %v205
    %v207 = vpop.f32.mrb[0].mxu0
    %v208 = vadd.f32 0.0, %v207
    %v209 = vpop.f32.mrb[0].mxu0
    %v210 = vadd.f32 0.0, %v209
    %v211 = vpop.f32.mrb[0].mxu0
    %v212 = vadd.f32 0.0, %v211
    %213 = vmatprep.mubr.bf16.mxu0 0
    %214 = vmatmul.mubr.bf16.gmra.mrb[0].mxu0 %v116
    %v215 = vpop.f32.mrb[0].mxu0
    %v216 = vadd.f32 0.0, %v215
    %v217 = vpop.f32.mrb[0].mxu0
    %v218 = vadd.f32 0.0, %v217
    %v219 = vpop.f32.mrb[0].mxu0
    %v220 = vadd.f32 0.0, %v219
    %v221 = vpop.f32.mrb[0].mxu0
    %v222 = vadd.f32 0.0, %v221
    %223 = vmatprep.mubr.bf16.mxu0 0
    %224 = vmatmul.mubr.bf16.gmra.mrb[0].mxu0 %v119
    %v225 = vpop.f32.mrb[0].mxu0
    %v226 = vadd.f32 0.0, %v225
    %v227 = vpop.f32.mrb[0].mxu0
    %v228 = vadd.f32 0.0, %v227
    %v229 = vpop.f32.mrb[0].mxu0
    %v230 = vadd.f32 0.0, %v229
    %v231 = vpop.f32.mrb[0].mxu0
    %v232 = vadd.f32 0.0, %v231
    %233 = vdwg.mxu0
    %234 = vmatprep.subr.bf16.mxu0 %v91
    %235 = vmatpush1.bf16.msra.mxu0 %v90
    %236 = vmatprep.subr.bf16.mxu0 0
    %237 = vmatpush1.bf16.msra.mxu0 0
    %238 = vmatprep.subr.bf16.mxu0 0
    %239 = vmatpush1.bf16.msra.mxu0 0
    %240 = vmatprep.subr.bf16.mxu0 0
    %241 = vmatpush1.bf16.msra.mxu0 0
    %242 = vmatprep.subr.bf16.mxu0 0
    %243 = vmatpush1.bf16.msra.mxu0 0
    %244 = vmatprep.subr.bf16.mxu0 0
    %245 = vmatpush1.bf16.msra.mxu0 0
    %246 = vmatprep.subr.bf16.mxu0 0
    %247 = vmatpush1.bf16.msra.mxu0 0
    %248 = vmatprep.subr.bf16.mxu0 0
    %249 = vmatpush1.bf16.msra.mxu0 0
    %250 = vmatprep.subr.bf16.mxu0 0
    %251 = vmatpush1.bf16.msra.mxu0 0
    %252 = vmatprep.subr.bf16.mxu0 0
    %253 = vmatpush1.bf16.msra.mxu0 0
    %254 = vmatprep.subr.bf16.mxu0 0
    %255 = vmatpush1.bf16.msra.mxu0 0
    %256 = vmatprep.subr.bf16.mxu0 0
    %257 = vmatpush1.bf16.msra.mxu0 0
    %258 = vmatprep.subr.bf16.mxu0 0
    %259 = vmatpush1.bf16.msra.mxu0 0
    %260 = vmatprep.subr.bf16.mxu0 0
    %261 = vmatpush1.bf16.msra.mxu0 0
    %262 = vmatprep.subr.bf16.mxu0 0
    %263 = vmatpush1.bf16.msra.mxu0 0
    %264 = vmatprep.subr.bf16.mxu0 0
    %265 = vmatpush1.bf16.msra.mxu0 0
    %266 = vmatprep.mubr.bf16.mxu0 0
    %267 = vmatmul.mubr.bf16.gmra.mrb[0].mxu0 %v98
    %v268 = vpop.f32.mrb[0].mxu0
    %v269 = vadd.f32 0.0, %v268
    %v270 = vpop.f32.mrb[0].mxu0
    %v271 = vadd.f32 0.0, %v270
    %v272 = vpop.f32.mrb[0].mxu0
    %v273 = vadd.f32 0.0, %v272
    %v274 = vpop.f32.mrb[0].mxu0
    %v275 = vadd.f32 0.0, %v274
    %276 = vmatprep.mubr.bf16.mxu0 0
    %277 = vmatmul.mubr.bf16.gmra.mrb[0].mxu0 %v101
    %v278 = vpop.f32.mrb[0].mxu0
    %v279 = vadd.f32 0.0, %v278
    %v280 = vpop.f32.mrb[0].mxu0
    %v281 = vadd.f32 0.0, %v280
    %v282 = vpop.f32.mrb[0].mxu0
    %v283 = vadd.f32 0.0, %v282
    %v284 = vpop.f32.mrb[0].mxu0
    %v285 = vadd.f32 0.0, %v284
    %286 = vmatprep.mubr.bf16.mxu0 0
    %287 = vmatmul.mubr.bf16.gmra.mrb[0].mxu0 %v104
    %v288 = vpop.f32.mrb[0].mxu0
    %v289 = vadd.f32 0.0, %v288
    %v290 = vpop.f32.mrb[0].mxu0
    %v291 = vadd.f32 0.0, %v290
    %v292 = vpop.f32.mrb[0].mxu0
    %v293 = vadd.f32 0.0, %v292
    %v294 = vpop.f32.mrb[0].mxu0
    %v295 = vadd.f32 0.0, %v294
    %296 = vmatprep.mubr.bf16.mxu0 0
    %297 = vmatmul.mubr.bf16.gmra.mrb[0].mxu0 %v107
    %v298 = vpop.f32.mrb[0].mxu0
    %v299 = vadd.f32 0.0, %v298
    %v300 = vpop.f32.mrb[0].mxu0
    %v301 = vadd.f32 0.0, %v300
    %v302 = vpop.f32.mrb[0].mxu0
    %v303 = vadd.f32 0.0, %v302
    %v304 = vpop.f32.mrb[0].mxu0
    %v305 = vadd.f32 0.0, %v304
    %306 = vmatprep.mubr.bf16.mxu0 0
    %307 = vmatmul.mubr.bf16.gmra.mrb[0].mxu0 %v110
    %v308 = vpop.f32.mrb[0].mxu0
    %v309 = vadd.f32 0.0, %v308
    %v310 = vpop.f32.mrb[0].mxu0
    %v311 = vadd.f32 0.0, %v310
    %v312 = vpop.f32.mrb[0].mxu0
    %v313 = vadd.f32 0.0, %v312
    %v314 = vpop.f32.mrb[0].mxu0
    %v315 = vadd.f32 0.0, %v314
    %316 = vmatprep.mubr.bf16.mxu0 0
    %317 = vmatmul.mubr.bf16.gmra.mrb[0].mxu0 %v113
    %v318 = vpop.f32.mrb[0].mxu0
    %v319 = vadd.f32 0.0, %v318
    %v320 = vpop.f32.mrb[0].mxu0
    %v321 = vadd.f32 0.0, %v320
    %v322 = vpop.f32.mrb[0].mxu0
    %v323 = vadd.f32 0.0, %v322
    %v324 = vpop.f32.mrb[0].mxu0
    %v325 = vadd.f32 0.0, %v324
    %326 = vmatprep.mubr.bf16.mxu0 0
    %327 = vmatmul.mubr.bf16.gmra.mrb[0].mxu0 %v116
    %v328 = vpop.f32.mrb[0].mxu0
    %v329 = vadd.f32 0.0, %v328
    %v330 = vpop.f32.mrb[0].mxu0
    %v331 = vadd.f32 0.0, %v330
    %v332 = vpop.f32.mrb[0].mxu0
    %v333 = vadd.f32 0.0, %v332
    %v334 = vpop.f32.mrb[0].mxu0
    %v335 = vadd.f32 0.0, %v334
    %336 = vmatprep.mubr.bf16.mxu0 0
    %337 = vmatmul.mubr.bf16.gmra.mrb[0].mxu0 %v119
    %v338 = vpop.f32.mrb[0].mxu0
    %v339 = vadd.f32 0.0, %v338
    %v340 = vpop.f32.mrb[0].mxu0
    %v341 = vadd.f32 0.0, %v340
    %v342 = vpop.f32.mrb[0].mxu0
    %v343 = vadd.f32 0.0, %v342
    %v344 = vpop.f32.mrb[0].mxu0
    %v345 = vadd.f32 0.0, %v344
    %346 = vdwg.mxu0
    %347 = vst [vmem:[#allocation2] sm:$0xff] %v156
    %348 = vst [vmem:[#allocation2 + $0x8] sm:$0xff] %v158
    %349 = vst [vmem:[#allocation2 + $0x10] sm:$0xff] %v269
    %350 = vst [vmem:[#allocation2 + $0x18] sm:$0xff] %v271
    %351 = vst [vmem:[#allocation2 + $0x20] sm:$0xff] %v160
    %352 = vst [vmem:[#allocation2 + $0x28] sm:$0xff] %v162
    %353 = vst [vmem:[#allocation2 + $0x30] sm:$0xff] %v273
    %354 = vst [vmem:[#allocation2 + $0x38] sm:$0xff] %v275
    %355 = vst [vmem:[#allocation2 + $0x40] sm:$0xff] %v166
    %356 = vst [vmem:[#allocation2 + $0x48] sm:$0xff] %v168
    %357 = vst [vmem:[#allocation2 + $0x50] sm:$0xff] %v279
    %358 = vst [vmem:[#allocation2 + $0x58] sm:$0xff] %v281
    %359 = vst [vmem:[#allocation2 + $0x60] sm:$0xff] %v170
    %360 = vst [vmem:[#allocation2 + $0x68] sm:$0xff] %v172
    %361 = vst [vmem:[#allocation2 + $0x70] sm:$0xff] %v283
    %362 = vst [vmem:[#allocation2 + $0x78] sm:$0xff] %v285
    %363 = vst [vmem:[#allocation2 + $0x80] sm:$0xff] %v176
    %364 = vst [vmem:[#allocation2 + $0x88] sm:$0xff] %v178
    %365 = vst [vmem:[#allocation2 + $0x90] sm:$0xff] %v289
    %366 = vst [vmem:[#allocation2 + $0x98] sm:$0xff] %v291
    %367 = vst [vmem:[#allocation2 + $0xa0] sm:$0xff] %v180
    %368 = vst [vmem:[#allocation2 + $0xa8] sm:$0xff] %v182
    %369 = vst [vmem:[#allocation2 + $0xb0] sm:$0xff] %v293
    %370 = vst [vmem:[#allocation2 + $0xb8] sm:$0xff] %v295
    %371 = vst [vmem:[#allocation2 + $0xc0] sm:$0xff] %v186
    %372 = vst [vmem:[#allocation2 + $0xc8] sm:$0xff] %v188
    %373 = vst [vmem:[#allocation2 + $0xd0] sm:$0xff] %v299
    %374 = vst [vmem:[#allocation2 + $0xd8] sm:$0xff] %v301
    %375 = vst [vmem:[#allocation2 + $0xe0] sm:$0xff] %v190
    %376 = vst [vmem:[#allocation2 + $0xe8] sm:$0xff] %v192
    %377 = vst [vmem:[#allocation2 + $0xf0] sm:$0xff] %v303
    %378 = vst [vmem:[#allocation2 + $0xf8] sm:$0xff] %v305
    %379 = vst [vmem:[#allocation2 + $0x100] sm:$0xff] %v196
    %380 = vst [vmem:[#allocation2 + $0x108] sm:$0xff] %v198
    %381 = vst [vmem:[#allocation2 + $0x110] sm:$0xff] %v309
    %382 = vst [vmem:[#allocation2 + $0x118] sm:$0xff] %v311
    %383 = vst [vmem:[#allocation2 + $0x120] sm:$0xff] %v200
    %384 = vst [vmem:[#allocation2 + $0x128] sm:$0xff] %v202
    %385 = vst [vmem:[#allocation2 + $0x130] sm:$0xff] %v313
    %386 = vst [vmem:[#allocation2 + $0x138] sm:$0xff] %v315
    %387 = vst [vmem:[#allocation2 + $0x140] sm:$0xff] %v206
    %388 = vst [vmem:[#allocation2 + $0x148] sm:$0xff] %v208
    %389 = vst [vmem:[#allocation2 + $0x150] sm:$0xff] %v319
    %390 = vst [vmem:[#allocation2 + $0x158] sm:$0xff] %v321
    %391 = vst [vmem:[#allocation2 + $0x160] sm:$0xff] %v210
    %392 = vst [vmem:[#allocation2 + $0x168] sm:$0xff] %v212
    %393 = vst [vmem:[#allocation2 + $0x170] sm:$0xff] %v323
    %394 = vst [vmem:[#allocation2 + $0x178] sm:$0xff] %v325
    %395 = vst [vmem:[#allocation2 + $0x180] sm:$0xff] %v216
    %396 = vst [vmem:[#allocation2 + $0x188] sm:$0xff] %v218
    %397 = vst [vmem:[#allocation2 + $0x190] sm:$0xff] %v329
    %398 = vst [vmem:[#allocation2 + $0x198] sm:$0xff] %v331
    %399 = vst [vmem:[#allocation2 + $0x1a0] sm:$0xff] %v220
    %400 = vst [vmem:[#allocation2 + $0x1a8] sm:$0xff] %v222
    %401 = vst [vmem:[#allocation2 + $0x1b0] sm:$0xff] %v333
    %402 = vst [vmem:[#allocation2 + $0x1b8] sm:$0xff] %v335
    %403 = vst [vmem:[#allocation2 + $0x1c0] sm:$0xff] %v226
    %404 = vst [vmem:[#allocation2 + $0x1c8] sm:$0xff] %v228
    %405 = vst [vmem:[#allocation2 + $0x1d0] sm:$0xff] %v339
    %406 = vst [vmem:[#allocation2 + $0x1d8] sm:$0xff] %v341
    %407 = vst [vmem:[#allocation2 + $0x1e0] sm:$0xff] %v230
    %408 = vst [vmem:[#allocation2 + $0x1e8] sm:$0xff] %v232
    %409 = vst [vmem:[#allocation2 + $0x1f0] sm:$0xff] %v343
    %410 = vst [vmem:[#allocation2 + $0x1f8] sm:$0xff] %v345
    %p411 = scmp.eq.s32.totalorder 0, 0
    // Predicated region
    $region10: #{tpu_custom_call.1} parent=1 // pred_check
      %p412 = pneg %p411
    $region11: #{tpu_custom_call.1} parent=1 // pred_check_branch
      %414 = sbr.rel (%p412) target = $region13
    $region12: #{tpu_custom_call.1} parent=1 // pred_region
      %vm415 = vcmask 7168
      %416 = vst.msk [vmem:[%s3] sm:$0xff] %vm415, 0.0
      %417 = vst.msk [vmem:[%s3 + $0x8] sm:$0xff] %vm415, 0.0
      %418 = vst.msk [vmem:[%s3 + $0x10] sm:$0xff] %vm415, 0.0
      %419 = vst.msk [vmem:[%s3 + $0x18] sm:$0xff] %vm415, 0.0
      %420 = vst.msk [vmem:[%s3 + $0x20] sm:$0xff] %vm415, 0.0
      %421 = vst.msk [vmem:[%s3 + $0x28] sm:$0xff] %vm415, 0.0
      %422 = vst.msk [vmem:[%s3 + $0x30] sm:$0xff] %vm415, 0.0
      %423 = vst.msk [vmem:[%s3 + $0x38] sm:$0xff] %vm415, 0.0
      %424 = vst.msk [vmem:[%s3 + $0x40] sm:$0xff] %vm415, 0.0
      %425 = vst.msk [vmem:[%s3 + $0x48] sm:$0xff] %vm415, 0.0
      %426 = vst.msk [vmem:[%s3 + $0x50] sm:$0xff] %vm415, 0.0
      %427 = vst.msk [vmem:[%s3 + $0x58] sm:$0xff] %vm415, 0.0
      %428 = vst.msk [vmem:[%s3 + $0x60] sm:$0xff] %vm415, 0.0
      %429 = vst.msk [vmem:[%s3 + $0x68] sm:$0xff] %vm415, 0.0
      %430 = vst.msk [vmem:[%s3 + $0x70] sm:$0xff] %vm415, 0.0
      %431 = vst.msk [vmem:[%s3 + $0x78] sm:$0xff] %vm415, 0.0
      %432 = vst.msk [vmem:[%s4] sm:$0xff] %vm415, 0.0
      %433 = vst.msk [vmem:[%s4 + $0x8] sm:$0xff] %vm415, 0.0
      %434 = vst.msk [vmem:[%s4 + $0x10] sm:$0xff] %vm415, 0.0
      %435 = vst.msk [vmem:[%s4 + $0x18] sm:$0xff] %vm415, 0.0
      %436 = vst.msk [vmem:[%s4 + $0x20] sm:$0xff] %vm415, 0.0
      %437 = vst.msk [vmem:[%s4 + $0x28] sm:$0xff] %vm415, 0.0
      %438 = vst.msk [vmem:[%s4 + $0x30] sm:$0xff] %vm415, 0.0
      %439 = vst.msk [vmem:[%s4 + $0x38] sm:$0xff] %vm415, 0.0
      %440 = vst.msk [vmem:[%s4 + $0x40] sm:$0xff] %vm415, 0.0
      %441 = vst.msk [vmem:[%s4 + $0x48] sm:$0xff] %vm415, 0.0
      %442 = vst.msk [vmem:[%s4 + $0x50] sm:$0xff] %vm415, 0.0
      %443 = vst.msk [vmem:[%s4 + $0x58] sm:$0xff] %vm415, 0.0
      %444 = vst.msk [vmem:[%s4 + $0x60] sm:$0xff] %vm415, 0.0
      %445 = vst.msk [vmem:[%s4 + $0x68] sm:$0xff] %vm415, 0.0
      %446 = vst.msk [vmem:[%s4 + $0x70] sm:$0xff] %vm415, 0.0
      %447 = vst.msk [vmem:[%s4 + $0x78] sm:$0xff] %vm415, 0.0
    $region13: #{tpu_custom_call.1} parent=1 // pred_fallthru
      _
    %v448 = vld [vmem:[%s3] sm:$0xff]
    %v449 = vld [vmem:[%s3 + $0x8] sm:$0xff]
    %v450 = vld [vmem:[%s3 + $0x10] sm:$0xff]
    %v451 = vld [vmem:[%s3 + $0x18] sm:$0xff]
    %v452 = vld [vmem:[%s3 + $0x20] sm:$0xff]
    %v453 = vld [vmem:[%s3 + $0x28] sm:$0xff]
    %v454 = vld [vmem:[%s3 + $0x30] sm:$0xff]
    %v455 = vld [vmem:[%s3 + $0x38] sm:$0xff]
    %v456 = vld [vmem:[%s3 + $0x40] sm:$0xff]
    %v457 = vld [vmem:[%s3 + $0x48] sm:$0xff]
    %v458 = vld [vmem:[%s3 + $0x50] sm:$0xff]
    %v459 = vld [vmem:[%s3 + $0x58] sm:$0xff]
    %v460 = vld [vmem:[%s3 + $0x60] sm:$0xff]
    %v461 = vld [vmem:[%s3 + $0x68] sm:$0xff]
    %v462 = vld [vmem:[%s3 + $0x70] sm:$0xff]
    %v463 = vld [vmem:[%s3 + $0x78] sm:$0xff]
    %v464 = vadd.f32 %v156, %v158
    %v465 = vadd.f32 %v464, %v269
    %v466 = vadd.f32 %v465, %v271
    %467 = vadd.xlane.f32.xlu0 %v466
    %v468 = vpop.xlane.xlu0 %467
    %v469 = vadd.f32 %v160, %v162
    %v470 = vadd.f32 %v469, %v273
    %v471 = vadd.f32 %v470, %v275
    %472 = vadd.xlane.f32.xlu0 %v471
    %v473 = vpop.xlane.xlu0 %472
    %v474 = vadd.f32 %v166, %v168
    %v475 = vadd.f32 %v474, %v279
    %v476 = vadd.f32 %v475, %v281
    %477 = vadd.xlane.f32.xlu0 %v476
    %v478 = vpop.xlane.xlu0 %477
    %v479 = vadd.f32 %v170, %v172
    %v480 = vadd.f32 %v479, %v283
    %v481 = vadd.f32 %v480, %v285
    %482 = vadd.xlane.f32.xlu0 %v481
    %v483 = vpop.xlane.xlu0 %482
    %v484 = vadd.f32 %v176, %v178
    %v485 = vadd.f32 %v484, %v289
    %v486 = vadd.f32 %v485, %v291
    %487 = vadd.xlane.f32.xlu0 %v486
    %v488 = vpop.xlane.xlu0 %487
    %v489 = vadd.f32 %v180, %v182
    %v490 = vadd.f32 %v489, %v293
    %v491 = vadd.f32 %v490, %v295
    %492 = vadd.xlane.f32.xlu0 %v491
    %v493 = vpop.xlane.xlu0 %492
    %v494 = vadd.f32 %v186, %v188
    %v495 = vadd.f32 %v494, %v299
    %v496 = vadd.f32 %v495, %v301
    %497 = vadd.xlane.f32.xlu0 %v496
    %v498 = vpop.xlane.xlu0 %497
    %v499 = vadd.f32 %v190, %v192
    %v500 = vadd.f32 %v499, %v303
    %v501 = vadd.f32 %v500, %v305
    %502 = vadd.xlane.f32.xlu0 %v501
    %v503 = vpop.xlane.xlu0 %502
    %v504 = vadd.f32 %v196, %v198
    %v505 = vadd.f32 %v504, %v309
    %v506 = vadd.f32 %v505, %v311
    %507 = vadd.xlane.f32.xlu0 %v506
    %v508 = vpop.xlane.xlu0 %507
    %v509 = vadd.f32 %v200, %v202
    %v510 = vadd.f32 %v509, %v313
    %v511 = vadd.f32 %v510, %v315
    %512 = vadd.xlane.f32.xlu0 %v511
    %v513 = vpop.xlane.xlu0 %512
    %v514 = vadd.f32 %v206, %v208
    %v515 = vadd.f32 %v514, %v319
    %v516 = vadd.f32 %v515, %v321
    %517 = vadd.xlane.f32.xlu0 %v516
    %v518 = vpop.xlane.xlu0 %517
    %v519 = vadd.f32 %v210, %v212
    %v520 = vadd.f32 %v519, %v323
    %v521 = vadd.f32 %v520, %v325
    %522 = vadd.xlane.f32.xlu0 %v521
    %v523 = vpop.xlane.xlu0 %522
    %v524 = vadd.f32 %v216, %v218
    %v525 = vadd.f32 %v524, %v329
    %v526 = vadd.f32 %v525, %v331
    %527 = vadd.xlane.f32.xlu0 %v526
    %v528 = vpop.xlane.xlu0 %527
    %v529 = vadd.f32 %v220, %v222
    %v530 = vadd.f32 %v529, %v333
    %v531 = vadd.f32 %v530, %v335
    %532 = vadd.xlane.f32.xlu0 %v531
    %v533 = vpop.xlane.xlu0 %532
    %v534 = vadd.f32 %v226, %v228
    %v535 = vadd.f32 %v534, %v339
    %v536 = vadd.f32 %v535, %v341
    %537 = vadd.xlane.f32.xlu0 %v536
    %v538 = vpop.xlane.xlu0 %537
    %v539 = vadd.f32 %v230, %v232
    %v540 = vadd.f32 %v539, %v343
    %v541 = vadd.f32 %v540, %v345
    %542 = vadd.xlane.f32.xlu0 %v541
    %v543 = vpop.xlane.xlu0 %542
    %v544 = vadd.f32 %v448, %v468
    %v545 = vadd.f32 %v449, %v473
    %v546 = vadd.f32 %v450, %v478
    %v547 = vadd.f32 %v451, %v483
    %v548 = vadd.f32 %v452, %v488
    %v549 = vadd.f32 %v453, %v493
    %v550 = vadd.f32 %v454, %v498
    %v551 = vadd.f32 %v455, %v503
    %v552 = vadd.f32 %v456, %v508
    %v553 = vadd.f32 %v457, %v513
    %v554 = vadd.f32 %v458, %v518
    %v555 = vadd.f32 %v459, %v523
    %v556 = vadd.f32 %v460, %v528
    %v557 = vadd.f32 %v461, %v533
    %v558 = vadd.f32 %v462, %v538
    %v559 = vadd.f32 %v463, %v543
    %vm560 = vcmask 7168
    %561 = vst.msk [vmem:[%s3] sm:$0xff] %vm560, %v544
    %562 = vst.msk [vmem:[%s3 + $0x8] sm:$0xff] %vm560, %v545
    %563 = vst.msk [vmem:[%s3 + $0x10] sm:$0xff] %vm560, %v546
    %564 = vst.msk [vmem:[%s3 + $0x18] sm:$0xff] %vm560, %v547
    %565 = vst.msk [vmem:[%s3 + $0x20] sm:$0xff] %vm560, %v548
    %566 = vst.msk [vmem:[%s3 + $0x28] sm:$0xff] %vm560, %v549
    %567 = vst.msk [vmem:[%s3 + $0x30] sm:$0xff] %vm560, %v550
    %568 = vst.msk [vmem:[%s3 + $0x38] sm:$0xff] %vm560, %v551
    %569 = vst.msk [vmem:[%s3 + $0x40] sm:$0xff] %vm560, %v552
    %570 = vst.msk [vmem:[%s3 + $0x48] sm:$0xff] %vm560, %v553
    %571 = vst.msk [vmem:[%s3 + $0x50] sm:$0xff] %vm560, %v554
    %572 = vst.msk [vmem:[%s3 + $0x58] sm:$0xff] %vm560, %v555
    %573 = vst.msk [vmem:[%s3 + $0x60] sm:$0xff] %vm560, %v556
    %574 = vst.msk [vmem:[%s3 + $0x68] sm:$0xff] %vm560, %v557
    %575 = vst.msk [vmem:[%s3 + $0x70] sm:$0xff] %vm560, %v558
    %576 = vst.msk [vmem:[%s3 + $0x78] sm:$0xff] %vm560, %v559
    %v577 = vld [vmem:[%s4] sm:$0xff]
    %v578 = vld [vmem:[%s4 + $0x8] sm:$0xff]
    %v579 = vld [vmem:[%s4 + $0x10] sm:$0xff]
    %v580 = vld [vmem:[%s4 + $0x18] sm:$0xff]
    %v581 = vld [vmem:[%s4 + $0x20] sm:$0xff]
    %v582 = vld [vmem:[%s4 + $0x28] sm:$0xff]
    %v583 = vld [vmem:[%s4 + $0x30] sm:$0xff]
    %v584 = vld [vmem:[%s4 + $0x38] sm:$0xff]
    %v585 = vld [vmem:[%s4 + $0x40] sm:$0xff]
    %v586 = vld [vmem:[%s4 + $0x48] sm:$0xff]
    %v587 = vld [vmem:[%s4 + $0x50] sm:$0xff]
    %v588 = vld [vmem:[%s4 + $0x58] sm:$0xff]
    %v589 = vld [vmem:[%s4 + $0x60] sm:$0xff]
    %v590 = vld [vmem:[%s4 + $0x68] sm:$0xff]
    %v591 = vld [vmem:[%s4 + $0x70] sm:$0xff]
    %v592 = vld [vmem:[%s4 + $0x78] sm:$0xff]
    %v593 = vmul.f32 %v156, %v156
    %v594 = vmul.f32 %v158, %v158
    %v595 = vmul.f32 %v269, %v269
    %v596 = vmul.f32 %v271, %v271
    %v597 = vmul.f32 %v160, %v160
    %v598 = vmul.f32 %v162, %v162
    %v599 = vmul.f32 %v273, %v273
    %v600 = vmul.f32 %v275, %v275
    %v601 = vmul.f32 %v166, %v166
    %v602 = vmul.f32 %v168, %v168
    %v603 = vmul.f32 %v279, %v279
    %v604 = vmul.f32 %v281, %v281
    %v605 = vmul.f32 %v170, %v170
    %v606 = vmul.f32 %v172, %v172
    %v607 = vmul.f32 %v283, %v283
    %v608 = vmul.f32 %v285, %v285
    %v609 = vmul.f32 %v176, %v176
    %v610 = vmul.f32 %v178, %v178
    %v611 = vmul.f32 %v289, %v289
    %v612 = vmul.f32 %v291, %v291
    %v613 = vmul.f32 %v180, %v180
    %v614 = vmul.f32 %v182, %v182
    %v615 = vmul.f32 %v293, %v293
    %v616 = vmul.f32 %v295, %v295
    %v617 = vmul.f32 %v186, %v186
    %v618 = vmul.f32 %v188, %v188
    %v619 = vmul.f32 %v299, %v299
    %v620 = vmul.f32 %v301, %v301
    %v621 = vmul.f32 %v190, %v190
    %v622 = vmul.f32 %v192, %v192
    %v623 = vmul.f32 %v303, %v303
    %v624 = vmul.f32 %v305, %v305
    %v625 = vmul.f32 %v196, %v196
    %v626 = vmul.f32 %v198, %v198
    %v627 = vmul.f32 %v309, %v309
    %v628 = vmul.f32 %v311, %v311
    %v629 = vmul.f32 %v200, %v200
    %v630 = vmul.f32 %v202, %v202
    %v631 = vmul.f32 %v313, %v313
    %v632 = vmul.f32 %v315, %v315
    %v633 = vmul.f32 %v206, %v206
    %v634 = vmul.f32 %v208, %v208
    %v635 = vmul.f32 %v319, %v319
    %v636 = vmul.f32 %v321, %v321
    %v637 = vmul.f32 %v210, %v210
    %v638 = vmul.f32 %v212, %v212
    %v639 = vmul.f32 %v323, %v323
    %v640 = vmul.f32 %v325, %v325
    %v641 = vmul.f32 %v216, %v216
    %v642 = vmul.f32 %v218, %v218
    %v643 = vmul.f32 %v329, %v329
    %v644 = vmul.f32 %v331, %v331
    %v645 = vmul.f32 %v220, %v220
    %v646 = vmul.f32 %v222, %v222
    %v647 = vmul.f32 %v333, %v333
    %v648 = vmul.f32 %v335, %v335
    %v649 = vmul.f32 %v226, %v226
    %v650 = vmul.f32 %v228, %v228
    %v651 = vmul.f32 %v339, %v339
    %v652 = vmul.f32 %v341, %v341
    %v653 = vmul.f32 %v230, %v230
    %v654 = vmul.f32 %v232, %v232
    %v655 = vmul.f32 %v343, %v343
    %v656 = vmul.f32 %v345, %v345
    %v657 = vadd.f32 %v593, %v594
    %v658 = vadd.f32 %v657, %v595
    %v659 = vadd.f32 %v658, %v596
    %660 = vadd.xlane.f32.xlu0 %v659
    %v661 = vpop.xlane.xlu0 %660
    %v662 = vadd.f32 %v597, %v598
    %v663 = vadd.f32 %v662, %v599
    %v664 = vadd.f32 %v663, %v600
    %665 = vadd.xlane.f32.xlu0 %v664
    %v666 = vpop.xlane.xlu0 %665
    %v667 = vadd.f32 %v601, %v602
    %v668 = vadd.f32 %v667, %v603
    %v669 = vadd.f32 %v668, %v604
    %670 = vadd.xlane.f32.xlu0 %v669
    %v671 = vpop.xlane.xlu0 %670
    %v672 = vadd.f32 %v605, %v606
    %v673 = vadd.f32 %v672, %v607
    %v674 = vadd.f32 %v673, %v608
    %675 = vadd.xlane.f32.xlu0 %v674
    %v676 = vpop.xlane.xlu0 %675
    %v677 = vadd.f32 %v609, %v610
    %v678 = vadd.f32 %v677, %v611
    %v679 = vadd.f32 %v678, %v612
    %680 = vadd.xlane.f32.xlu0 %v679
    %v681 = vpop.xlane.xlu0 %680
    %v682 = vadd.f32 %v613, %v614
    %v683 = vadd.f32 %v682, %v615
    %v684 = vadd.f32 %v683, %v616
    %685 = vadd.xlane.f32.xlu0 %v684
    %v686 = vpop.xlane.xlu0 %685
    %v687 = vadd.f32 %v617, %v618
    %v688 = vadd.f32 %v687, %v619
    %v689 = vadd.f32 %v688, %v620
    %690 = vadd.xlane.f32.xlu0 %v689
    %v691 = vpop.xlane.xlu0 %690
    %v692 = vadd.f32 %v621, %v622
    %v693 = vadd.f32 %v692, %v623
    %v694 = vadd.f32 %v693, %v624
    %695 = vadd.xlane.f32.xlu0 %v694
    %v696 = vpop.xlane.xlu0 %695
    %v697 = vadd.f32 %v625, %v626
    %v698 = vadd.f32 %v697, %v627
    %v699 = vadd.f32 %v698, %v628
    %700 = vadd.xlane.f32.xlu0 %v699
    %v701 = vpop.xlane.xlu0 %700
    %v702 = vadd.f32 %v629, %v630
    %v703 = vadd.f32 %v702, %v631
    %v704 = vadd.f32 %v703, %v632
    %705 = vadd.xlane.f32.xlu0 %v704
    %v706 = vpop.xlane.xlu0 %705
    %v707 = vadd.f32 %v633, %v634
    %v708 = vadd.f32 %v707, %v635
    %v709 = vadd.f32 %v708, %v636
    %710 = vadd.xlane.f32.xlu0 %v709
    %v711 = vpop.xlane.xlu0 %710
    %v712 = vadd.f32 %v637, %v638
    %v713 = vadd.f32 %v712, %v639
    %v714 = vadd.f32 %v713, %v640
    %715 = vadd.xlane.f32.xlu0 %v714
    %v716 = vpop.xlane.xlu0 %715
    %v717 = vadd.f32 %v641, %v642
    %v718 = vadd.f32 %v717, %v643
    %v719 = vadd.f32 %v718, %v644
    %720 = vadd.xlane.f32.xlu0 %v719
    %v721 = vpop.xlane.xlu0 %720
    %v722 = vadd.f32 %v645, %v646
    %v723 = vadd.f32 %v722, %v647
    %v724 = vadd.f32 %v723, %v648
    %725 = vadd.xlane.f32.xlu0 %v724
    %v726 = vpop.xlane.xlu0 %725
    %v727 = vadd.f32 %v649, %v650
    %v728 = vadd.f32 %v727, %v651
    %v729 = vadd.f32 %v728, %v652
    %730 = vadd.xlane.f32.xlu0 %v729
    %v731 = vpop.xlane.xlu0 %730
    %v732 = vadd.f32 %v653, %v654
    %v733 = vadd.f32 %v732, %v655
    %v734 = vadd.f32 %v733, %v656
    %735 = vadd.xlane.f32.xlu0 %v734
    %v736 = vpop.xlane.xlu0 %735
    %v737 = vadd.f32 %v577, %v661
    %v738 = vadd.f32 %v578, %v666
    %v739 = vadd.f32 %v579, %v671
    %v740 = vadd.f32 %v580, %v676
    %v741 = vadd.f32 %v581, %v681
    %v742 = vadd.f32 %v582, %v686
    %v743 = vadd.f32 %v583, %v691
    %v744 = vadd.f32 %v584, %v696
    %v745 = vadd.f32 %v585, %v701
    %v746 = vadd.f32 %v586, %v706
    %v747 = vadd.f32 %v587, %v711
    %v748 = vadd.f32 %v588, %v716
    %v749 = vadd.f32 %v589, %v721
    %v750 = vadd.f32 %v590, %v726
    %v751 = vadd.f32 %v591, %v731
    %v752 = vadd.f32 %v592, %v736
    %753 = vst.msk [vmem:[%s4] sm:$0xff] %vm560, %v737
    %754 = vst.msk [vmem:[%s4 + $0x8] sm:$0xff] %vm560, %v738
    %755 = vst.msk [vmem:[%s4 + $0x10] sm:$0xff] %vm560, %v739
    %756 = vst.msk [vmem:[%s4 + $0x18] sm:$0xff] %vm560, %v740
    %757 = vst.msk [vmem:[%s4 + $0x20] sm:$0xff] %vm560, %v741
    %758 = vst.msk [vmem:[%s4 + $0x28] sm:$0xff] %vm560, %v742
    %759 = vst.msk [vmem:[%s4 + $0x30] sm:$0xff] %vm560, %v743
    %760 = vst.msk [vmem:[%s4 + $0x38] sm:$0xff] %vm560, %v744
    %761 = vst.msk [vmem:[%s4 + $0x40] sm:$0xff] %vm560, %v745
    %762 = vst.msk [vmem:[%s4 + $0x48] sm:$0xff] %vm560, %v746
    %763 = vst.msk [vmem:[%s4 + $0x50] sm:$0xff] %vm560, %v747
    %764 = vst.msk [vmem:[%s4 + $0x58] sm:$0xff] %vm560, %v748
    %765 = vst.msk [vmem:[%s4 + $0x60] sm:$0xff] %vm560, %v749
    %766 = vst.msk [vmem:[%s4 + $0x68] sm:$0xff] %vm560, %v750
    %767 = vst.msk [vmem:[%s4 + $0x70] sm:$0xff] %vm560, %v751
    %768 = vst.msk [vmem:[%s4 + $0x78] sm:$0xff] %vm560, %v752
    // Predicated region
    $region14: #{tpu_custom_call.1} parent=1 // pred_check
      _
    $region15: #{tpu_custom_call.1} parent=1 // pred_check_branch
      %770 = sbr.rel (0) target = $region17
    $region16: #{tpu_custom_call.1} parent=1 // pred_region
      %s772 = ssub.s32 8192, 8192
      %773 = vsyncadd [#allocation3], %s772
      %s774 = sshll.u32 [#allocation2], 4
      %s775 = int_to_ptr.vmem [resolvable:$true] %s774
      %780 = dma.vmem_to_hbm [thread:$0]  %s775, 8192, %s2, [#allocation3], 512, 512, 32
    $region17: #{tpu_custom_call.1} parent=1 // pred_fallthru
      _
    // Predicated region
    $region18: #{tpu_custom_call.1} parent=1 // pred_check
      _
    $region19: #{tpu_custom_call.1} parent=1 // pred_check_branch
      %782 = sbr.rel (0) target = $region21
    $region20: #{tpu_custom_call.1} parent=1 // pred_region
      _
    $region21: #{tpu_custom_call.1} parent=1 // pred_fallthru
      _
    // Predicated region
    $region22: #{tpu_custom_call.1} parent=1 // pred_check
      _
    $region23: #{tpu_custom_call.1} parent=1 // pred_check_branch
      %784 = sbr.rel (0) target = $region25
    $region24: #{tpu_custom_call.1} parent=1 // pred_region
      _
    $region25: #{tpu_custom_call.1} parent=1 // pred_fallthru
      _
    // Predicated region
    $region26: #{tpu_custom_call.1} parent=1 // pred_check
      _
    $region27: #{tpu_custom_call.1} parent=1 // pred_check_branch
      %786 = sbr.rel (0) target = $region29
    $region28: #{tpu_custom_call.1} parent=1 // pred_region
      %787 = dma.done [#allocation3], 8192
    $region29: #{tpu_custom_call.1} parent=1 // pred_fallthru
      _
    // Predicated region
    $region30: #{tpu_custom_call.1} parent=1 // pred_check
      _
    $region31: #{tpu_custom_call.1} parent=1 // pred_check_branch
      %789 = sbr.rel (0) target = $region33
    $region32: #{tpu_custom_call.1} parent=1 // pred_region
      _
    $region33: #{tpu_custom_call.1} parent=1 // pred_fallthru
      _
    // Predicated region
    $region34: #{tpu_custom_call.1} parent=1 // pred_check
      _
    $region35: #{tpu_custom_call.1} parent=1 // pred_check_branch
      %791 = sbr.rel (0) target = $region37
    $region36: #{tpu_custom_call.1} parent=1 // pred_region
      _
    $region37: #{tpu_custom_call.1} parent=1 // pred_fallthru
      _
    %792 = vsyncpa [#allocation3], 1

</llo_original>
